<compile_context>
chip_gen: v5e
topology: v5e:2x2
jax: 0.10.0
libtpu: 0.0.40
codegen_flags: <defaults>
</compile_context>

<pallas_src>
import jax
import jax.numpy as jnp
from jax.experimental import pallas as pl
from jax.experimental.pallas import tpu as pltpu

OUT_PAD = 128  # lane-dense padded width of the packed (q1, q2) output slab


# --------------------------------------------------------------------------- #
# Kernel
# --------------------------------------------------------------------------- #
def _make_kernel(ep_dtype):
    """ep_dtype: dtype of the bias-add/ReLU epilogue (bf16 on v6e/v7x, f32 on v5e)."""

    def kernel(s_ref, a_ref,                       # (TILE_B, ns) / (TILE_B, na)
               w1s_ref, w1a_ref, b1_ref,           # head-1 layer1: (ns,H),(na,H),(1,H)
               w5s_ref, w5a_ref, b5_ref,           # head-2 layer1
               w2_ref, b2_ref, w6_ref, b6_ref,     # (H,H),(1,H) per head
               w3_ref, b3_ref, w7_ref, b7_ref,     # (H,H),(1,H) per head
               w4_ref, w8_ref, b48_ref,            # (H,128),(H,128),(1,128) packed heads
               q_ref):                             # (TILE_B,128): q1 lane0, q2 lane1
        s = s_ref[...].astype(jnp.bfloat16)
        a = a_ref[...].astype(jnp.bfloat16)

        def lin(x, w_ref):
            return jnp.dot(x, w_ref[...], preferred_element_type=jnp.float32)

        def epi(acc, b_ref):  # bias + ReLU in ep_dtype, bf16 operand for next matmul
            h = acc.astype(ep_dtype) + b_ref[...]
            return jnp.maximum(h, 0.0).astype(jnp.bfloat16)

        # Layer 1 / 5 : xu @ W computed as s @ Ws + a @ Wa (no lane concat needed).
        h1 = epi(lin(s, w1s_ref) + lin(a, w1a_ref), b1_ref)
        h2 = epi(lin(s, w5s_ref) + lin(a, w5a_ref), b5_ref)
        # Layer 2 / 6
        h1 = epi(lin(h1, w2_ref), b2_ref)
        h2 = epi(lin(h2, w6_ref), b6_ref)
        # Layer 3 / 7
        h1 = epi(lin(h1, w3_ref), b3_ref)
        h2 = epi(lin(h2, w7_ref), b7_ref)
        # Layer 4 / 8 : heads packed into one 128-lane slab (q1 -> lane 0, q2 -> lane 1).
        z = lin(h1, w4_ref) + lin(h2, w8_ref) + b48_ref[...]
        # sigmoid: exp -> EUP, approx reciprocal -> EUP as well (VALU stays free).
        q_ref[...] = pl.reciprocal(1.0 + jnp.exp(-z), approx=True)

    return kernel


# --------------------------------------------------------------------------- #
# Parameter init (matches torch weights_init_) and packing
# --------------------------------------------------------------------------- #
def _xavier_uniform(key, fan_in, fan_out):
    bound = (6.0 / (fan_in + fan_out)) ** 0.5
    return jax.random.uniform(key, (fan_in, fan_out), jnp.float32, -bound, bound)


def init_qnetwork_constraint_params(key, num_inputs, num_actions, hidden_dim=256):
    in_dim = num_inputs + num_actions
    dims = [
        (in_dim, hidden_dim),      # linear1
        (hidden_dim, hidden_dim),  # linear2
        (hidden_dim, hidden_dim),  # linear3
        (hidden_dim, 1),           # linear4
        (in_dim, hidden_dim),      # linear5
        (hidden_dim, hidden_dim),  # linear6
        (hidden_dim, hidden_dim),  # linear7
        (hidden_dim, 1),           # linear8
    ]
    keys = jax.random.split(key, len(dims))
    params = []
    for k, (fi, fo) in zip(keys, dims):
        w = _xavier_uniform(k, fi, fo)             # stored (in, out) = PyTorch weight.T
        b = jnp.zeros((1, fo), dtype=jnp.float32)  # constant 0 init
        params.append((w, b))
    return params


def _pack_params(params, num_inputs, ep_dtype):
    """Per-head bf16 weights; biases in epilogue dtype; final heads lane-packed."""
    (w1, b1), (w2, b2), (w3, b3), (w4, b4), (w5, b5), (w6, b6), (w7, b7), (w8, b8) = params

    def wb(w):
        return w.astype(jnp.bfloat16)

    def be(b):
        return b.astype(ep_dtype)

    w1s, w1a = w1[:num_inputs], w1[num_inputs:]
    w5s, w5a = w5[:num_inputs], w5[num_inputs:]

    # Final heads zero-padded into a shared 128-lane output slab (q1->lane0, q2->lane1).
    w4p = jnp.pad(w4, ((0, 0), (0, OUT_PAD - 1)))
    w8p = jnp.pad(w8, ((0, 0), (1, OUT_PAD - 2)))
    b48 = (jnp.pad(b4, ((0, 0), (0, OUT_PAD - 1)))
           + jnp.pad(b8, ((0, 0), (1, OUT_PAD - 2)))).astype(jnp.float32)

    return (wb(w1s), wb(w1a), be(b1),
            wb(w5s), wb(w5a), be(b5),
            wb(w2), be(b2), wb(w6), be(b6),
            wb(w3), be(b3), wb(w7), be(b7),
            wb(w4p), wb(w8p), b48)


# --------------------------------------------------------------------------- #
# Pallas-backed forward
# --------------------------------------------------------------------------- #
def _round_up(x, m):
    return (x + m - 1) // m * m


def _epilogue_dtype():
    """bf16 epilogue on chips with bf16 VALU (v6e/v7x); f32 otherwise (v5e & older)."""
    try:
        kind = jax.devices()[0].device_kind.lower()
    except Exception:
        return jnp.float32
    if any(tag in kind for tag in ("v6", "v7", "tpu7", "7x")):
        return jnp.bfloat16
    return jnp.float32


def _choose_tiling(batch):
    """tile_b multiple of 16 (bf16 sublanes), <=512 rows, >=2 tiles for large B (v7x)."""
    b_pad = _round_up(max(batch, 1), 16)
    if b_pad < 256:
        tile_b = b_pad                       # single tile; tiny batches
    else:
        n_tiles = max(2, pl.cdiv(b_pad, 512))
        tile_b = _round_up(pl.cdiv(b_pad, n_tiles), 16)
    b_pad = _round_up(b_pad, tile_b)
    return tile_b, b_pad


def qnetwork_constraint_forward(state, action, params):
    """Returns (q1, q2), each (B, 1) float32."""
    B, ns = state.shape
    na = action.shape[1]
    H = params[1][0].shape[0]

    ep_dtype = _epilogue_dtype()
    packed = _pack_params(params, ns, ep_dtype)

    tile_b, b_pad = _choose_tiling(B)
    state = state.astype(jnp.float32)
    action = action.astype(jnp.float32)
    if b_pad != B:
        state = jnp.pad(state, ((0, b_pad - B), (0, 0)))
        action = jnp.pad(action, ((0, b_pad - B), (0, 0)))

    grid = (b_pad // tile_b,)

    def resident(arr):   # weight/bias stays VMEM-resident across batch tiles
        return pl.BlockSpec(arr.shape, lambda i: (0, 0))

    in_specs = ([pl.BlockSpec((tile_b, ns), lambda i: (i, 0)),
                 pl.BlockSpec((tile_b, na), lambda i: (i, 0))]
                + [resident(x) for x in packed])
    out_specs = pl.BlockSpec((tile_b, OUT_PAD), lambda i: (i, 0))

    # VMEM budget close to the true footprint: resident weights (x2 buffers),
    # double-buffered I/O tiles, activation scratch, plus headroom. Cap at 32 MiB.
    weight_bytes = sum(int(x.size) * x.dtype.itemsize for x in packed)
    io_bytes = 2 * tile_b * (ns + na + OUT_PAD) * 4
    act_bytes = 8 * tile_b * H * 4
    vmem_limit = int(min(32 << 20,
                         max(8 << 20, 2 * weight_bytes + io_bytes + act_bytes + (4 << 20))))

    q_packed = pl.pallas_call(
        _make_kernel(ep_dtype),
        out_shape=jax.ShapeDtypeStruct((b_pad, OUT_PAD), jnp.float32),
        grid=grid,
        in_specs=in_specs,
        out_specs=out_specs,
        compiler_params=pltpu.CompilerParams(
            dimension_semantics=("parallel",),   # batch tiles independent -> 2 TCs on v7x
            vmem_limit_bytes=vmem_limit,
        ),
    )(state, action, *packed)

    return q_packed[:B, 0:1], q_packed[:B, 1:2]


# --------------------------------------------------------------------------- #
# References
# --------------------------------------------------------------------------- #
def _reference_forward(state, action, params, ep_dtype=None):
    """ep_dtype=None -> pure float32 reference; otherwise matches the kernel's
    bf16-operand / f32-accum / ep_dtype-epilogue arithmetic."""
    xu = jnp.concatenate([state, action], axis=1).astype(jnp.float32)

    def lin_relu(x, w, b):
        if ep_dtype is None:
            return jax.nn.relu(x @ w + b)
        acc = jnp.dot(x.astype(jnp.bfloat16), w.astype(jnp.bfloat16),
                      preferred_element_type=jnp.float32)
        h = acc.astype(ep_dtype) + b.astype(ep_dtype)
        return jnp.maximum(h, 0.0).astype(jnp.bfloat16)

    def head(x, layers):
        (wa, ba), (wb_, bb_), (wc, bc), (wd, bd) = layers
        h = lin_relu(x, wa, ba)
        h = lin_relu(h, wb_, bb_)
        h = lin_relu(h, wc, bc)
        if ep_dtype is None:
            return jax.nn.sigmoid(h @ wd + bd)
        z = jnp.dot(h, wd.astype(jnp.bfloat16), preferred_element_type=jnp.float32) + bd
        return jax.nn.sigmoid(z)

    q1 = head(xu, params[0:4])
    q2 = head(xu, params[4:8])
    return q1, q2


if __name__ == "__main__":
    root = jax.random.PRNGKey(0)
    configs = [
        dict(num_inputs=24, num_actions=8, hidden_dim=32, batch=8),     # single tile
        dict(num_inputs=24, num_actions=8, hidden_dim=64, batch=260),   # 2-tile grid + pad
    ]
    for cfg in configs:
        k_params, k_state, k_action, root = jax.random.split(root, 4)
        params = init_qnetwork_constraint_params(
            k_params, cfg["num_inputs"], cfg["num_actions"], cfg["hidden_dim"])
        state = jax.random.normal(k_state, (cfg["batch"], cfg["num_inputs"]), jnp.float32)
        action = jax.random.normal(k_action, (cfg["batch"], cfg["num_actions"]), jnp.float32)

        q1, q2 = qnetwork_constraint_forward(state, action, params)
        q1 = jax.block_until_ready(q1)
        q2 = jax.block_until_ready(q2)
        assert q1.shape == (cfg["batch"], 1) and q2.shape == (cfg["batch"], 1)

        # Matched-precision reference (bf16 operands, f32 accum, same epilogue dtype).
        ep = _epilogue_dtype()
        r1, r2 = _reference_forward(state, action, params, ep_dtype=ep)
        assert jnp.allclose(q1, r1, atol=5e-3, rtol=5e-3), (q1, r1)
        assert jnp.allclose(q2, r2, atol=5e-3, rtol=5e-3), (q2, r2)

        # Full-f32 reference: loose sanity check on the bf16 quantization error.
        f1, f2 = _reference_forward(state, action, params, ep_dtype=None)
        assert jnp.allclose(q1, f1, atol=5e-2, rtol=5e-2)
        assert jnp.allclose(q2, f2, atol=5e-2, rtol=5e-2)

    print("KERNEL_OK")
</pallas_src>

<mosaic_0001>
module attributes {stable_mosaic.version = 11 : i64} {
  func.func @kernel(%arg0: i32, %arg1: memref<16x24xf32, #tpu.memory_space<vmem>>, %arg2: memref<16x8xf32, #tpu.memory_space<vmem>>, %arg3: memref<24x32xbf16, #tpu.memory_space<vmem>>, %arg4: memref<8x32xbf16, #tpu.memory_space<vmem>>, %arg5: memref<1x32xf32, #tpu.memory_space<vmem>>, %arg6: memref<24x32xbf16, #tpu.memory_space<vmem>>, %arg7: memref<8x32xbf16, #tpu.memory_space<vmem>>, %arg8: memref<1x32xf32, #tpu.memory_space<vmem>>, %arg9: memref<32x32xbf16, #tpu.memory_space<vmem>>, %arg10: memref<1x32xf32, #tpu.memory_space<vmem>>, %arg11: memref<32x32xbf16, #tpu.memory_space<vmem>>, %arg12: memref<1x32xf32, #tpu.memory_space<vmem>>, %arg13: memref<32x32xbf16, #tpu.memory_space<vmem>>, %arg14: memref<1x32xf32, #tpu.memory_space<vmem>>, %arg15: memref<32x32xbf16, #tpu.memory_space<vmem>>, %arg16: memref<1x32xf32, #tpu.memory_space<vmem>>, %arg17: memref<32x128xbf16, #tpu.memory_space<vmem>>, %arg18: memref<32x128xbf16, #tpu.memory_space<vmem>>, %arg19: memref<1x128xf32, #tpu.memory_space<vmem>>, %arg20: memref<16x128xf32, #tpu.memory_space<vmem>>) attributes {dimension_semantics = [#tpu.dimension_semantics<parallel>], iteration_bounds = array<i64: 1>, scalar_prefetch = 0 : i64, scratch_operands = 0 : i64, tpu.core_type = #tpu.core_type<tc>, window_params = [{transform_indices = @transform_0, window_bounds = array<i64: 16, 24>}, {transform_indices = @transform_1, window_bounds = array<i64: 16, 8>}, {pipeline_mode = #tpu.pipeline_mode<synchronous>, transform_indices = @transform_2, window_bounds = array<i64: 24, 32>}, {pipeline_mode = #tpu.pipeline_mode<synchronous>, transform_indices = @transform_3, window_bounds = array<i64: 8, 32>}, {pipeline_mode = #tpu.pipeline_mode<synchronous>, transform_indices = @transform_4, window_bounds = array<i64: 1, 32>}, {pipeline_mode = #tpu.pipeline_mode<synchronous>, transform_indices = @transform_5, window_bounds = array<i64: 24, 32>}, {pipeline_mode = #tpu.pipeline_mode<synchronous>, transform_indices = @transform_6, window_bounds = array<i64: 8, 32>}, {pipeline_mode = #tpu.pipeline_mode<synchronous>, transform_indices = @transform_7, window_bounds = array<i64: 1, 32>}, {pipeline_mode = #tpu.pipeline_mode<synchronous>, transform_indices = @transform_8, window_bounds = array<i64: 32, 32>}, {pipeline_mode = #tpu.pipeline_mode<synchronous>, transform_indices = @transform_9, window_bounds = array<i64: 1, 32>}, {pipeline_mode = #tpu.pipeline_mode<synchronous>, transform_indices = @transform_10, window_bounds = array<i64: 32, 32>}, {pipeline_mode = #tpu.pipeline_mode<synchronous>, transform_indices = @transform_11, window_bounds = array<i64: 1, 32>}, {pipeline_mode = #tpu.pipeline_mode<synchronous>, transform_indices = @transform_12, window_bounds = array<i64: 32, 32>}, {pipeline_mode = #tpu.pipeline_mode<synchronous>, transform_indices = @transform_13, window_bounds = array<i64: 1, 32>}, {pipeline_mode = #tpu.pipeline_mode<synchronous>, transform_indices = @transform_14, window_bounds = array<i64: 32, 32>}, {pipeline_mode = #tpu.pipeline_mode<synchronous>, transform_indices = @transform_15, window_bounds = array<i64: 1, 32>}, {pipeline_mode = #tpu.pipeline_mode<synchronous>, transform_indices = @transform_16, window_bounds = array<i64: 32, 128>}, {pipeline_mode = #tpu.pipeline_mode<synchronous>, transform_indices = @transform_17, window_bounds = array<i64: 32, 128>}, {pipeline_mode = #tpu.pipeline_mode<synchronous>, transform_indices = @transform_18, window_bounds = array<i64: 1, 128>}, {transform_indices = @transform_19, window_bounds = array<i64: 16, 128>}]} {
    %c0 = arith.constant 0 : index
    %c0_0 = arith.constant 0 : index
    %0 = vector.load %arg1[%c0, %c0_0] : memref<16x24xf32, #tpu.memory_space<vmem>>, vector<16x24xf32>
    %1 = arith.truncf %0 : vector<16x24xf32> to vector<16x24xbf16>
    %c0_1 = arith.constant 0 : index
    %c0_2 = arith.constant 0 : index
    %2 = vector.load %arg2[%c0_1, %c0_2] : memref<16x8xf32, #tpu.memory_space<vmem>>, vector<16x8xf32>
    %3 = arith.truncf %2 : vector<16x8xf32> to vector<16x8xbf16>
    %c0_3 = arith.constant 0 : index
    %c0_4 = arith.constant 0 : index
    %4 = vector.load %arg3[%c0_3, %c0_4] : memref<24x32xbf16, #tpu.memory_space<vmem>>, vector<24x32xbf16>
    %cst = arith.constant dense<0.000000e+00> : vector<16x32xf32>
    %5 = tpu.matmul %1, %4, %cst {dimension_numbers = #tpu.dot_dimension_numbers<[1], [0], [0], [1], [0, 0, 1, 1], [], []>} : vector<16x24xbf16>, vector<24x32xbf16>, vector<16x32xf32> -> vector<16x32xf32>
    %c0_5 = arith.constant 0 : index
    %c0_6 = arith.constant 0 : index
    %6 = vector.load %arg4[%c0_5, %c0_6] : memref<8x32xbf16, #tpu.memory_space<vmem>>, vector<8x32xbf16>
    %cst_7 = arith.constant dense<0.000000e+00> : vector<16x32xf32>
    %7 = tpu.matmul %3, %6, %cst_7 {dimension_numbers = #tpu.dot_dimension_numbers<[1], [0], [0], [1], [0, 0, 1, 1], [], []>} : vector<16x8xbf16>, vector<8x32xbf16>, vector<16x32xf32> -> vector<16x32xf32>
    %8 = arith.addf %5, %7 : vector<16x32xf32>
    %c0_8 = arith.constant 0 : index
    %c0_9 = arith.constant 0 : index
    %9 = vector.load %arg5[%c0_8, %c0_9] : memref<1x32xf32, #tpu.memory_space<vmem>>, vector<1x32xf32>
    %10 = vector.broadcast %9 : vector<1x32xf32> to vector<16x32xf32>
    %11 = arith.addf %8, %10 : vector<16x32xf32>
    %cst_10 = arith.constant 0.000000e+00 : f32
    %12 = vector.broadcast %cst_10 : f32 to vector<16x32xf32>
    %13 = arith.maximumf %11, %12 : vector<16x32xf32>
    %14 = arith.truncf %13 : vector<16x32xf32> to vector<16x32xbf16>
    %c0_11 = arith.constant 0 : index
    %c0_12 = arith.constant 0 : index
    %15 = vector.load %arg6[%c0_11, %c0_12] : memref<24x32xbf16, #tpu.memory_space<vmem>>, vector<24x32xbf16>
    %cst_13 = arith.constant dense<0.000000e+00> : vector<16x32xf32>
    %16 = tpu.matmul %1, %15, %cst_13 {dimension_numbers = #tpu.dot_dimension_numbers<[1], [0], [0], [1], [0, 0, 1, 1], [], []>} : vector<16x24xbf16>, vector<24x32xbf16>, vector<16x32xf32> -> vector<16x32xf32>
    %c0_14 = arith.constant 0 : index
    %c0_15 = arith.constant 0 : index
    %17 = vector.load %arg7[%c0_14, %c0_15] : memref<8x32xbf16, #tpu.memory_space<vmem>>, vector<8x32xbf16>
    %cst_16 = arith.constant dense<0.000000e+00> : vector<16x32xf32>
    %18 = tpu.matmul %3, %17, %cst_16 {dimension_numbers = #tpu.dot_dimension_numbers<[1], [0], [0], [1], [0, 0, 1, 1], [], []>} : vector<16x8xbf16>, vector<8x32xbf16>, vector<16x32xf32> -> vector<16x32xf32>
    %19 = arith.addf %16, %18 : vector<16x32xf32>
    %c0_17 = arith.constant 0 : index
    %c0_18 = arith.constant 0 : index
    %20 = vector.load %arg8[%c0_17, %c0_18] : memref<1x32xf32, #tpu.memory_space<vmem>>, vector<1x32xf32>
    %21 = vector.broadcast %20 : vector<1x32xf32> to vector<16x32xf32>
    %22 = arith.addf %19, %21 : vector<16x32xf32>
    %cst_19 = arith.constant 0.000000e+00 : f32
    %23 = vector.broadcast %cst_19 : f32 to vector<16x32xf32>
    %24 = arith.maximumf %22, %23 : vector<16x32xf32>
    %25 = arith.truncf %24 : vector<16x32xf32> to vector<16x32xbf16>
    %c0_20 = arith.constant 0 : index
    %c0_21 = arith.constant 0 : index
    %26 = vector.load %arg9[%c0_20, %c0_21] : memref<32x32xbf16, #tpu.memory_space<vmem>>, vector<32x32xbf16>
    %cst_22 = arith.constant dense<0.000000e+00> : vector<16x32xf32>
    %27 = tpu.matmul %14, %26, %cst_22 {dimension_numbers = #tpu.dot_dimension_numbers<[1], [0], [0], [1], [0, 0, 1, 1], [], []>} : vector<16x32xbf16>, vector<32x32xbf16>, vector<16x32xf32> -> vector<16x32xf32>
    %c0_23 = arith.constant 0 : index
    %c0_24 = arith.constant 0 : index
    %28 = vector.load %arg10[%c0_23, %c0_24] : memref<1x32xf32, #tpu.memory_space<vmem>>, vector<1x32xf32>
    %29 = vector.broadcast %28 : vector<1x32xf32> to vector<16x32xf32>
    %30 = arith.addf %27, %29 : vector<16x32xf32>
    %cst_25 = arith.constant 0.000000e+00 : f32
    %31 = vector.broadcast %cst_25 : f32 to vector<16x32xf32>
    %32 = arith.maximumf %30, %31 : vector<16x32xf32>
    %33 = arith.truncf %32 : vector<16x32xf32> to vector<16x32xbf16>
    %c0_26 = arith.constant 0 : index
    %c0_27 = arith.constant 0 : index
    %34 = vector.load %arg11[%c0_26, %c0_27] : memref<32x32xbf16, #tpu.memory_space<vmem>>, vector<32x32xbf16>
    %cst_28 = arith.constant dense<0.000000e+00> : vector<16x32xf32>
    %35 = tpu.matmul %25, %34, %cst_28 {dimension_numbers = #tpu.dot_dimension_numbers<[1], [0], [0], [1], [0, 0, 1, 1], [], []>} : vector<16x32xbf16>, vector<32x32xbf16>, vector<16x32xf32> -> vector<16x32xf32>
    %c0_29 = arith.constant 0 : index
    %c0_30 = arith.constant 0 : index
    %36 = vector.load %arg12[%c0_29, %c0_30] : memref<1x32xf32, #tpu.memory_space<vmem>>, vector<1x32xf32>
    %37 = vector.broadcast %36 : vector<1x32xf32> to vector<16x32xf32>
    %38 = arith.addf %35, %37 : vector<16x32xf32>
    %cst_31 = arith.constant 0.000000e+00 : f32
    %39 = vector.broadcast %cst_31 : f32 to vector<16x32xf32>
    %40 = arith.maximumf %38, %39 : vector<16x32xf32>
    %41 = arith.truncf %40 : vector<16x32xf32> to vector<16x32xbf16>
    %c0_32 = arith.constant 0 : index
    %c0_33 = arith.constant 0 : index
    %42 = vector.load %arg13[%c0_32, %c0_33] : memref<32x32xbf16, #tpu.memory_space<vmem>>, vector<32x32xbf16>
    %cst_34 = arith.constant dense<0.000000e+00> : vector<16x32xf32>
    %43 = tpu.matmul %33, %42, %cst_34 {dimension_numbers = #tpu.dot_dimension_numbers<[1], [0], [0], [1], [0, 0, 1, 1], [], []>} : vector<16x32xbf16>, vector<32x32xbf16>, vector<16x32xf32> -> vector<16x32xf32>
    %c0_35 = arith.constant 0 : index
    %c0_36 = arith.constant 0 : index
    %44 = vector.load %arg14[%c0_35, %c0_36] : memref<1x32xf32, #tpu.memory_space<vmem>>, vector<1x32xf32>
    %45 = vector.broadcast %44 : vector<1x32xf32> to vector<16x32xf32>
    %46 = arith.addf %43, %45 : vector<16x32xf32>
    %cst_37 = arith.constant 0.000000e+00 : f32
    %47 = vector.broadcast %cst_37 : f32 to vector<16x32xf32>
    %48 = arith.maximumf %46, %47 : vector<16x32xf32>
    %49 = arith.truncf %48 : vector<16x32xf32> to vector<16x32xbf16>
    %c0_38 = arith.constant 0 : index
    %c0_39 = arith.constant 0 : index
    %50 = vector.load %arg15[%c0_38, %c0_39] : memref<32x32xbf16, #tpu.memory_space<vmem>>, vector<32x32xbf16>
    %cst_40 = arith.constant dense<0.000000e+00> : vector<16x32xf32>
    %51 = tpu.matmul %41, %50, %cst_40 {dimension_numbers = #tpu.dot_dimension_numbers<[1], [0], [0], [1], [0, 0, 1, 1], [], []>} : vector<16x32xbf16>, vector<32x32xbf16>, vector<16x32xf32> -> vector<16x32xf32>
    %c0_41 = arith.constant 0 : index
    %c0_42 = arith.constant 0 : index
    %52 = vector.load %arg16[%c0_41, %c0_42] : memref<1x32xf32, #tpu.memory_space<vmem>>, vector<1x32xf32>
    %53 = vector.broadcast %52 : vector<1x32xf32> to vector<16x32xf32>
    %54 = arith.addf %51, %53 : vector<16x32xf32>
    %cst_43 = arith.constant 0.000000e+00 : f32
    %55 = vector.broadcast %cst_43 : f32 to vector<16x32xf32>
    %56 = arith.maximumf %54, %55 : vector<16x32xf32>
    %57 = arith.truncf %56 : vector<16x32xf32> to vector<16x32xbf16>
    %c0_44 = arith.constant 0 : index
    %c0_45 = arith.constant 0 : index
    %58 = vector.load %arg17[%c0_44, %c0_45] : memref<32x128xbf16, #tpu.memory_space<vmem>>, vector<32x128xbf16>
    %cst_46 = arith.constant dense<0.000000e+00> : vector<16x128xf32>
    %59 = tpu.matmul %49, %58, %cst_46 {dimension_numbers = #tpu.dot_dimension_numbers<[1], [0], [0], [1], [0, 0, 1, 1], [], []>} : vector<16x32xbf16>, vector<32x128xbf16>, vector<16x128xf32> -> vector<16x128xf32>
    %c0_47 = arith.constant 0 : index
    %c0_48 = arith.constant 0 : index
    %60 = vector.load %arg18[%c0_47, %c0_48] : memref<32x128xbf16, #tpu.memory_space<vmem>>, vector<32x128xbf16>
    %cst_49 = arith.constant dense<0.000000e+00> : vector<16x128xf32>
    %61 = tpu.matmul %57, %60, %cst_49 {dimension_numbers = #tpu.dot_dimension_numbers<[1], [0], [0], [1], [0, 0, 1, 1], [], []>} : vector<16x32xbf16>, vector<32x128xbf16>, vector<16x128xf32> -> vector<16x128xf32>
    %62 = arith.addf %59, %61 : vector<16x128xf32>
    %c0_50 = arith.constant 0 : index
    %c0_51 = arith.constant 0 : index
    %63 = vector.load %arg19[%c0_50, %c0_51] : memref<1x128xf32, #tpu.memory_space<vmem>>, vector<1x128xf32>
    %64 = vector.broadcast %63 : vector<1x128xf32> to vector<16x128xf32>
    %65 = arith.addf %62, %64 : vector<16x128xf32>
    %cst_52 = arith.constant 0.000000e+00 : f32
    %66 = vector.broadcast %cst_52 : f32 to vector<16x128xf32>
    %67 = arith.subf %66, %65 : vector<16x128xf32>
    %68 = math.exp %67 : vector<16x128xf32>
    %cst_53 = arith.constant 1.000000e+00 : f32
    %69 = vector.broadcast %cst_53 : f32 to vector<16x128xf32>
    %70 = arith.addf %69, %68 : vector<16x128xf32>
    %71 = tpu.reciprocal %70 {approx = true} : vector<16x128xf32> -> vector<16x128xf32>
    %c0_54 = arith.constant 0 : index
    %c0_55 = arith.constant 0 : index
    %72 = vector.load %arg20[%c0_54, %c0_55] : memref<16x128xf32, #tpu.memory_space<vmem>>, vector<16x128xf32>
    tpu.vector_store %arg20[%c0_54, %c0_55], %71 {strides = array<i32>} : memref<16x128xf32, #tpu.memory_space<vmem>>, vector<16x128xf32>,
    return
  }
  func.func @transform_0(%arg0: i32) -> (i32, i32) {
    %c0_i32 = arith.constant 0 : i32
    %c0_i32_0 = arith.constant 0 : i32
    return %arg0, %c0_i32 : i32, i32
  }
  func.func @transform_1(%arg0: i32) -> (i32, i32) {
    %c0_i32 = arith.constant 0 : i32
    %c0_i32_0 = arith.constant 0 : i32
    return %arg0, %c0_i32 : i32, i32
  }
  func.func @transform_2(%arg0: i32) -> (i32, i32) {
    %c0_i32 = arith.constant 0 : i32
    %c0_i32_0 = arith.constant 0 : i32
    %c0_i32_1 = arith.constant 0 : i32
    return %c0_i32, %c0_i32_0 : i32, i32
  }
  func.func @transform_3(%arg0: i32) -> (i32, i32) {
    %c0_i32 = arith.constant 0 : i32
    %c0_i32_0 = arith.constant 0 : i32
    %c0_i32_1 = arith.constant 0 : i32
    return %c0_i32, %c0_i32_0 : i32, i32
  }
  func.func @transform_4(%arg0: i32) -> (i32, i32) {
    %c0_i32 = arith.constant 0 : i32
    %c0_i32_0 = arith.constant 0 : i32
    %c0_i32_1 = arith.constant 0 : i32
    return %c0_i32, %c0_i32_0 : i32, i32
  }
  func.func @transform_5(%arg0: i32) -> (i32, i32) {
    %c0_i32 = arith.constant 0 : i32
    %c0_i32_0 = arith.constant 0 : i32
    %c0_i32_1 = arith.constant 0 : i32
    return %c0_i32, %c0_i32_0 : i32, i32
  }
  func.func @transform_6(%arg0: i32) -> (i32, i32) {
    %c0_i32 = arith.constant 0 : i32
    %c0_i32_0 = arith.constant 0 : i32
    %c0_i32_1 = arith.constant 0 : i32
    return %c0_i32, %c0_i32_0 : i32, i32
  }
  func.func @transform_7(%arg0: i32) -> (i32, i32) {
    %c0_i32 = arith.constant 0 : i32
    %c0_i32_0 = arith.constant 0 : i32
    %c0_i32_1 = arith.constant 0 : i32
    return %c0_i32, %c0_i32_0 : i32, i32
  }
  func.func @transform_8(%arg0: i32) -> (i32, i32) {
    %c0_i32 = arith.constant 0 : i32
    %c0_i32_0 = arith.constant 0 : i32
    %c0_i32_1 = arith.constant 0 : i32
    return %c0_i32, %c0_i32_0 : i32, i32
  }
  func.func @transform_9(%arg0: i32) -> (i32, i32) {
    %c0_i32 = arith.constant 0 : i32
    %c0_i32_0 = arith.constant 0 : i32
    %c0_i32_1 = arith.constant 0 : i32
    return %c0_i32, %c0_i32_0 : i32, i32
  }
  func.func @transform_10(%arg0: i32) -> (i32, i32) {
    %c0_i32 = arith.constant 0 : i32
    %c0_i32_0 = arith.constant 0 : i32
    %c0_i32_1 = arith.constant 0 : i32
    return %c0_i32, %c0_i32_0 : i32, i32
  }
  func.func @transform_11(%arg0: i32) -> (i32, i32) {
    %c0_i32 = arith.constant 0 : i32
    %c0_i32_0 = arith.constant 0 : i32
    %c0_i32_1 = arith.constant 0 : i32
    return %c0_i32, %c0_i32_0 : i32, i32
  }
  func.func @transform_12(%arg0: i32) -> (i32, i32) {
    %c0_i32 = arith.constant 0 : i32
    %c0_i32_0 = arith.constant 0 : i32
    %c0_i32_1 = arith.constant 0 : i32
    return %c0_i32, %c0_i32_0 : i32, i32
  }
  func.func @transform_13(%arg0: i32) -> (i32, i32) {
    %c0_i32 = arith.constant 0 : i32
    %c0_i32_0 = arith.constant 0 : i32
    %c0_i32_1 = arith.constant 0 : i32
    return %c0_i32, %c0_i32_0 : i32, i32
  }
  func.func @transform_14(%arg0: i32) -> (i32, i32) {
    %c0_i32 = arith.constant 0 : i32
    %c0_i32_0 = arith.constant 0 : i32
    %c0_i32_1 = arith.constant 0 : i32
    return %c0_i32, %c0_i32_0 : i32, i32
  }
  func.func @transform_15(%arg0: i32) -> (i32, i32) {
    %c0_i32 = arith.constant 0 : i32
    %c0_i32_0 = arith.constant 0 : i32
    %c0_i32_1 = arith.constant 0 : i32
    return %c0_i32, %c0_i32_0 : i32, i32
  }
  func.func @transform_16(%arg0: i32) -> (i32, i32) {
    %c0_i32 = arith.constant 0 : i32
    %c0_i32_0 = arith.constant 0 : i32
    %c0_i32_1 = arith.constant 0 : i32
    return %c0_i32, %c0_i32_0 : i32, i32
  }
  func.func @transform_17(%arg0: i32) -> (i32, i32) {
    %c0_i32 = arith.constant 0 : i32
    %c0_i32_0 = arith.constant 0 : i32
    %c0_i32_1 = arith.constant 0 : i32
    return %c0_i32, %c0_i32_0 : i32, i32
  }
  func.func @transform_18(%arg0: i32) -> (i32, i32) {
    %c0_i32 = arith.constant 0 : i32
    %c0_i32_0 = arith.constant 0 : i32
    %c0_i32_1 = arith.constant 0 : i32
    return %c0_i32, %c0_i32_0 : i32, i32
  }
  func.func @transform_19(%arg0: i32) -> (i32, i32) {
    %c0_i32 = arith.constant 0 : i32
    %c0_i32_0 = arith.constant 0 : i32
    return %arg0, %c0_i32 : i32, i32
  }
}

</mosaic_0001>

<llo_original>
// kernel: tpu_custom_call.1
$region0: #{tpu_custom_call.1}
  #allocation0 [shape = 'u32[]', space=smem, size = 0x4, offset = 0x4, fixed_abs, tag = 'smem constant byte address 0x4 - core index']
  #allocation1 [shape = 'u32[72,128]{1,0:T(1,128)}', space=vmem, size = 0x9000, scoped, tag = 'internal scratch']
  %s0 = inlined_call_operand.vmem [shape: f32[16,24], index: 0, kind: input, shape index: {}]
  %s1 = inlined_call_operand.vmem [shape: f32[16,8], index: 1, kind: input, shape index: {}]
  %s2 = inlined_call_operand.hbm [shape: bf16[24,32], index: 2, kind: input, shape index: {}]
  %s3 = inlined_call_operand.hbm [shape: bf16[8,32], index: 3, kind: input, shape index: {}]
  %s4 = inlined_call_operand.hbm [shape: f32[1,32], index: 4, kind: input, shape index: {}]
  %s5 = inlined_call_operand.hbm [shape: bf16[24,32], index: 5, kind: input, shape index: {}]
  %s6 = inlined_call_operand.hbm [shape: bf16[8,32], index: 6, kind: input, shape index: {}]
  %s7 = inlined_call_operand.hbm [shape: f32[1,32], index: 7, kind: input, shape index: {}]
  %s8 = inlined_call_operand.hbm [shape: bf16[32,32], index: 8, kind: input, shape index: {}]
  %s9 = inlined_call_operand.hbm [shape: f32[1,32], index: 9, kind: input, shape index: {}]
  %s10 = inlined_call_operand.vmem [shape: bf16[32,32], index: 10, kind: input, shape index: {}]
  %s11 = inlined_call_operand.vmem [shape: f32[1,32], index: 11, kind: input, shape index: {}]
  %s12 = inlined_call_operand.hbm [shape: bf16[32,32], index: 12, kind: input, shape index: {}]
  %s13 = inlined_call_operand.vmem [shape: f32[1,32], index: 13, kind: input, shape index: {}]
  %s14 = inlined_call_operand.hbm [shape: bf16[32,32], index: 14, kind: input, shape index: {}]
  %s15 = inlined_call_operand.vmem [shape: f32[1,32], index: 15, kind: input, shape index: {}]
  %s16 = inlined_call_operand.hbm [shape: bf16[32,128], index: 16, kind: input, shape index: {}]
  %s17 = inlined_call_operand.hbm [shape: bf16[32,128], index: 17, kind: input, shape index: {}]
  %s18 = inlined_call_operand.vmem [shape: f32[1,128], index: 18, kind: input, shape index: {}]
  %s19 = inlined_call_operand.hbm [shape: f32[16,128], index: 19, kind: output, shape index: {}]
  %s20 = sld [smem:[#allocation0]]
  $region134: #{tpu_custom_call.1} parent=0
    _
  %s22 = ssub.s32 1, %s20
  %s23 = scalar_select 0, %s22, %s20
  $region1: #{tpu_custom_call.1} parent=0
    #allocation2 [shape = 'u8[6144]{0}', space=vmem, size = 0x1800, scoped, tag = 'input window, operand 2, single buffered']
    #allocation3 [shape = 's32[1]{0}', space=sflag, size = 0x4, scoped, tag = 'scoped memory for tpu_custom_call.1']
    #allocation4 [shape = 's32[1]{0}', space=sflag, size = 0x4, scoped, tag = 'scoped memory for tpu_custom_call.1']
    #allocation5 [shape = 'u8[2048]{0}', space=vmem, size = 0x800, scoped, tag = 'input window, operand 3, single buffered']
    #allocation6 [shape = 's32[1]{0}', space=sflag, size = 0x4, scoped, tag = 'scoped memory for tpu_custom_call.1']
    #allocation7 [shape = 'u8[512]{0}', space=vmem, size = 0x400, scoped, tag = 'input window, operand 4, single buffered']
    #allocation8 [shape = 'u8[6144]{0}', space=vmem, size = 0x1800, scoped, tag = 'input window, operand 5, single buffered']
    #allocation9 [shape = 's32[1]{0}', space=sflag, size = 0x4, scoped, tag = 'scoped memory for tpu_custom_call.1']
    #allocation10 [shape = 'u8[2048]{0}', space=vmem, size = 0x800, scoped, tag = 'input window, operand 6, single buffered']
    #allocation11 [shape = 'u8[512]{0}', space=vmem, size = 0x400, scoped, tag = 'input window, operand 7, single buffered']
    #allocation12 [shape = 's32[1]{0}', space=sflag, size = 0x4, scoped, tag = 'scoped memory for tpu_custom_call.1']
    #allocation13 [shape = 'u8[8192]{0}', space=vmem, size = 0x2000, scoped, tag = 'input window, operand 8, single buffered']
    #allocation14 [shape = 'u8[512]{0}', space=vmem, size = 0x400, scoped, tag = 'input window, operand 9, single buffered']
    #allocation15 [shape = 's32[1]{0}', space=sflag, size = 0x4, scoped, tag = 'scoped memory for tpu_custom_call.1']
    #allocation16 [shape = 'u8[8192]{0}', space=vmem, size = 0x2000, scoped, tag = 'input window, operand 12, single buffered']
    #allocation17 [shape = 'u8[8192]{0}', space=vmem, size = 0x2000, scoped, tag = 'input window, operand 14, single buffered']
    #allocation18 [shape = 's32[1]{0}', space=sflag, size = 0x4, scoped, tag = 'scoped memory for tpu_custom_call.1']
    #allocation19 [shape = 'u8[8192]{0}', space=vmem, size = 0x2000, scoped, tag = 'input window, operand 16, single buffered']
    #allocation20 [shape = 'u8[8192]{0}', space=vmem, size = 0x2000, scoped, tag = 'input window, operand 17, single buffered']
    #allocation21 [shape = 's32[1]{0}', space=sflag, size = 0x4, scoped, tag = 'scoped memory for tpu_custom_call.1']
    #allocation22 [shape = 'u8[8192]{0}', space=vmem, size = 0x2000, scoped, tag = 'output window, operand 0, single buffered']
    %24 = vsyncpa [#allocation3], 0
    %25 = vsyncpa [#allocation6], 0
    %26 = vsyncpa [#allocation9], 0
    %27 = vsyncpa [#allocation12], 0
    %28 = vsyncpa [#allocation15], 0
    %29 = vsyncpa [#allocation18], 0
    %30 = vsyncpa [#allocation21], 0
    %31 = vsyncpa [#allocation4], 0
    // Predicated region
    $region2: #{tpu_custom_call.1} parent=1 // pred_check
      _
    $region3: #{tpu_custom_call.1} parent=1 // pred_check_branch
      %33 = sbr.rel (0) target = $region5
    $region4: #{tpu_custom_call.1} parent=1 // pred_region
      _
    $region5: #{tpu_custom_call.1} parent=1 // pred_fallthru
      _
    // Predicated region
    $region6: #{tpu_custom_call.1} parent=1 // pred_check
      _
    $region7: #{tpu_custom_call.1} parent=1 // pred_check_branch
      %35 = sbr.rel (0) target = $region9
    $region8: #{tpu_custom_call.1} parent=1 // pred_region
      _
    $region9: #{tpu_custom_call.1} parent=1 // pred_fallthru
      _
    // Predicated region
    $region10: #{tpu_custom_call.1} parent=1 // pred_check
      _
    $region11: #{tpu_custom_call.1} parent=1 // pred_check_branch
      %37 = sbr.rel (0) target = $region13
    $region12: #{tpu_custom_call.1} parent=1 // pred_region
      %39 = vsyncadd [#allocation3], 0
      %s40 = sshll.u32 %s2, 4
      %s41 = int_to_ptr.hbm [resolvable:$true] %s40
      %s42 = sshll.u32 [#allocation2], 4
      %s43 = int_to_ptr.vmem [resolvable:$true] %s42
      %48 = dma.hbm_to_vmem [thread:$0]  %s41, 192, %s43, [#allocation3], 64, 64, 4
    $region13: #{tpu_custom_call.1} parent=1 // pred_fallthru
      _
    // Predicated region
    $region14: #{tpu_custom_call.1} parent=1 // pred_check
      _
    $region15: #{tpu_custom_call.1} parent=1 // pred_check_branch
      %50 = sbr.rel (0) target = $region17
    $region16: #{tpu_custom_call.1} parent=1 // pred_region
      %52 = vsyncadd [#allocation6], 0
      %s54 = sshll.u32 %s3, 4
      %s55 = int_to_ptr.hbm [resolvable:$true] %s54
      %s56 = sshll.u32 [#allocation5], 4
      %s57 = int_to_ptr.vmem [resolvable:$true] %s56
      %59 = dma.hbm_to_vmem [thread:$0]  %s55, 64, %s57, [#allocation6]
    $region17: #{tpu_custom_call.1} parent=1 // pred_fallthru
      _
    // Predicated region
    $region18: #{tpu_custom_call.1} parent=1 // pred_check
      _
    $region19: #{tpu_custom_call.1} parent=1 // pred_check_branch
      %61 = sbr.rel (0) target = $region21
    $region20: #{tpu_custom_call.1} parent=1 // pred_region
      %63 = vsyncadd [#allocation6], 0
      %s65 = sshll.u32 %s4, 4
      %s66 = int_to_ptr.hbm [resolvable:$true] %s65
      %s67 = sshll.u32 [#allocation7], 4
      %s68 = int_to_ptr.vmem [resolvable:$true] %s67
      %70 = dma.hbm_to_vmem [thread:$0]  %s66, 16, %s68, [#allocation6]
    $region21: #{tpu_custom_call.1} parent=1 // pred_fallthru
      _
    // Predicated region
    $region22: #{tpu_custom_call.1} parent=1 // pred_check
      _
    $region23: #{tpu_custom_call.1} parent=1 // pred_check_branch
      %72 = sbr.rel (0) target = $region25
    $region24: #{tpu_custom_call.1} parent=1 // pred_region
      %74 = vsyncadd [#allocation9], 0
      %s75 = sshll.u32 %s5, 4
      %s76 = int_to_ptr.hbm [resolvable:$true] %s75
      %s77 = sshll.u32 [#allocation8], 4
      %s78 = int_to_ptr.vmem [resolvable:$true] %s77
      %83 = dma.hbm_to_vmem [thread:$0]  %s76, 192, %s78, [#allocation9], 64, 64, 4
    $region25: #{tpu_custom_call.1} parent=1 // pred_fallthru
      _
    // Predicated region
    $region26: #{tpu_custom_call.1} parent=1 // pred_check
      _
    $region27: #{tpu_custom_call.1} parent=1 // pred_check_branch
      %85 = sbr.rel (0) target = $region29
    $region28: #{tpu_custom_call.1} parent=1 // pred_region
      %87 = vsyncadd [#allocation9], 0
      %s89 = sshll.u32 %s6, 4
      %s90 = int_to_ptr.hbm [resolvable:$true] %s89
      %s91 = sshll.u32 [#allocation10], 4
      %s92 = int_to_ptr.vmem [resolvable:$true] %s91
      %94 = dma.hbm_to_vmem [thread:$0]  %s90, 64, %s92, [#allocation9]
    $region29: #{tpu_custom_call.1} parent=1 // pred_fallthru
      _
    // Predicated region
    $region30: #{tpu_custom_call.1} parent=1 // pred_check
      _
    $region31: #{tpu_custom_call.1} parent=1 // pred_check_branch
      %96 = sbr.rel (0) target = $region33
    $region32: #{tpu_custom_call.1} parent=1 // pred_region
      %98 = vsyncadd [#allocation12], 0
      %s100 = sshll.u32 %s7, 4
      %s101 = int_to_ptr.hbm [resolvable:$true] %s100
      %s102 = sshll.u32 [#allocation11], 4
      %s103 = int_to_ptr.vmem [resolvable:$true] %s102
      %105 = dma.hbm_to_vmem [thread:$0]  %s101, 16, %s103, [#allocation12]
    $region33: #{tpu_custom_call.1} parent=1 // pred_fallthru
      _
    // Predicated region
    $region34: #{tpu_custom_call.1} parent=1 // pred_check
      _
    $region35: #{tpu_custom_call.1} parent=1 // pred_check_branch
      %107 = sbr.rel (0) target = $region37
    $region36: #{tpu_custom_call.1} parent=1 // pred_region
      %109 = vsyncadd [#allocation12], 0
      %s110 = sshll.u32 %s8, 4
      %s111 = int_to_ptr.hbm [resolvable:$true] %s110
      %s112 = sshll.u32 [#allocation13], 4
      %s113 = int_to_ptr.vmem [resolvable:$true] %s112
      %118 = dma.hbm_to_vmem [thread:$0]  %s111, 256, %s113, [#allocation12], 64, 64, 4
    $region37: #{tpu_custom_call.1} parent=1 // pred_fallthru
      _
    // Predicated region
    $region38: #{tpu_custom_call.1} parent=1 // pred_check
      _
    $region39: #{tpu_custom_call.1} parent=1 // pred_check_branch
      %120 = sbr.rel (0) target = $region41
    $region40: #{tpu_custom_call.1} parent=1 // pred_region
      %122 = vsyncadd [#allocation15], 0
      %s124 = sshll.u32 %s9, 4
      %s125 = int_to_ptr.hbm [resolvable:$true] %s124
      %s126 = sshll.u32 [#allocation14], 4
      %s127 = int_to_ptr.vmem [resolvable:$true] %s126
      %129 = dma.hbm_to_vmem [thread:$0]  %s125, 16, %s127, [#allocation15]
    $region41: #{tpu_custom_call.1} parent=1 // pred_fallthru
      _
    // Predicated region
    $region42: #{tpu_custom_call.1} parent=1 // pred_check
      _
    $region43: #{tpu_custom_call.1} parent=1 // pred_check_branch
      %131 = sbr.rel (0) target = $region45
    $region44: #{tpu_custom_call.1} parent=1 // pred_region
      _
    $region45: #{tpu_custom_call.1} parent=1 // pred_fallthru
      _
    // Predicated region
    $region46: #{tpu_custom_call.1} parent=1 // pred_check
      _
    $region47: #{tpu_custom_call.1} parent=1 // pred_check_branch
      %133 = sbr.rel (0) target = $region49
    $region48: #{tpu_custom_call.1} parent=1 // pred_region
      _
    $region49: #{tpu_custom_call.1} parent=1 // pred_fallthru
      _
    // Predicated region
    $region50: #{tpu_custom_call.1} parent=1 // pred_check
      _
    $region51: #{tpu_custom_call.1} parent=1 // pred_check_branch
      %135 = sbr.rel (0) target = $region53
    $region52: #{tpu_custom_call.1} parent=1 // pred_region
      %137 = vsyncadd [#allocation15], 0
      %s138 = sshll.u32 %s12, 4
      %s139 = int_to_ptr.hbm [resolvable:$true] %s138
      %s140 = sshll.u32 [#allocation16], 4
      %s141 = int_to_ptr.vmem [resolvable:$true] %s140
      %146 = dma.hbm_to_vmem [thread:$0]  %s139, 256, %s141, [#allocation15], 64, 64, 4
    $region53: #{tpu_custom_call.1} parent=1 // pred_fallthru
      _
    // Predicated region
    $region54: #{tpu_custom_call.1} parent=1 // pred_check
      _
    $region55: #{tpu_custom_call.1} parent=1 // pred_check_branch
      %148 = sbr.rel (0) target = $region57
    $region56: #{tpu_custom_call.1} parent=1 // pred_region
      _
    $region57: #{tpu_custom_call.1} parent=1 // pred_fallthru
      _
    // Predicated region
    $region58: #{tpu_custom_call.1} parent=1 // pred_check
      _
    $region59: #{tpu_custom_call.1} parent=1 // pred_check_branch
      %150 = sbr.rel (0) target = $region61
    $region60: #{tpu_custom_call.1} parent=1 // pred_region
      %152 = vsyncadd [#allocation18], 0
      %s153 = sshll.u32 %s14, 4
      %s154 = int_to_ptr.hbm [resolvable:$true] %s153
      %s155 = sshll.u32 [#allocation17], 4
      %s156 = int_to_ptr.vmem [resolvable:$true] %s155
      %161 = dma.hbm_to_vmem [thread:$0]  %s154, 256, %s156, [#allocation18], 64, 64, 4
    $region61: #{tpu_custom_call.1} parent=1 // pred_fallthru
      _
    // Predicated region
    $region62: #{tpu_custom_call.1} parent=1 // pred_check
      _
    $region63: #{tpu_custom_call.1} parent=1 // pred_check_branch
      %163 = sbr.rel (0) target = $region65
    $region64: #{tpu_custom_call.1} parent=1 // pred_region
      _
    $region65: #{tpu_custom_call.1} parent=1 // pred_fallthru
      _
    // Predicated region
    $region66: #{tpu_custom_call.1} parent=1 // pred_check
      _
    $region67: #{tpu_custom_call.1} parent=1 // pred_check_branch
      %165 = sbr.rel (0) target = $region69
    $region68: #{tpu_custom_call.1} parent=1 // pred_region
      %167 = vsyncadd [#allocation18], 0
      %s168 = sshll.u32 %s16, 4
      %s169 = int_to_ptr.hbm [resolvable:$true] %s168
      %s170 = sshll.u32 [#allocation19], 4
      %s171 = int_to_ptr.vmem [resolvable:$true] %s170
      %176 = dma.hbm_to_vmem [thread:$0]  %s169, 256, %s171, [#allocation18], 64, 64, 4
    $region69: #{tpu_custom_call.1} parent=1 // pred_fallthru
      _
    // Predicated region
    $region70: #{tpu_custom_call.1} parent=1 // pred_check
      _
    $region71: #{tpu_custom_call.1} parent=1 // pred_check_branch
      %178 = sbr.rel (0) target = $region73
    $region72: #{tpu_custom_call.1} parent=1 // pred_region
      %180 = vsyncadd [#allocation21], 0
      %s181 = sshll.u32 %s17, 4
      %s182 = int_to_ptr.hbm [resolvable:$true] %s181
      %s183 = sshll.u32 [#allocation20], 4
      %s184 = int_to_ptr.vmem [resolvable:$true] %s183
      %189 = dma.hbm_to_vmem [thread:$0]  %s182, 256, %s184, [#allocation21], 64, 64, 4
    $region73: #{tpu_custom_call.1} parent=1 // pred_fallthru
      _
    // Predicated region
    $region74: #{tpu_custom_call.1} parent=1 // pred_check
      _
    $region75: #{tpu_custom_call.1} parent=1 // pred_check_branch
      %191 = sbr.rel (0) target = $region77
    $region76: #{tpu_custom_call.1} parent=1 // pred_region
      _
    $region77: #{tpu_custom_call.1} parent=1 // pred_fallthru
      _
    // Predicated region
    $region78: #{tpu_custom_call.1} parent=1 // pred_check
      _
    $region79: #{tpu_custom_call.1} parent=1 // pred_check_branch
      %193 = sbr.rel (0) target = $region81
    $region80: #{tpu_custom_call.1} parent=1 // pred_region
      %195 = dma.done [#allocation3], 192
    $region81: #{tpu_custom_call.1} parent=1 // pred_fallthru
      _
    // Predicated region
    $region82: #{tpu_custom_call.1} parent=1 // pred_check
      _
    $region83: #{tpu_custom_call.1} parent=1 // pred_check_branch
      %197 = sbr.rel (0) target = $region85
    $region84: #{tpu_custom_call.1} parent=1 // pred_region
      %199 = dma.done [#allocation6], 64
    $region85: #{tpu_custom_call.1} parent=1 // pred_fallthru
      _
    // Predicated region
    $region86: #{tpu_custom_call.1} parent=1 // pred_check
      _
    $region87: #{tpu_custom_call.1} parent=1 // pred_check_branch
      %201 = sbr.rel (0) target = $region89
    $region88: #{tpu_custom_call.1} parent=1 // pred_region
      %203 = dma.done [#allocation6], 16
    $region89: #{tpu_custom_call.1} parent=1 // pred_fallthru
      _
    // Predicated region
    $region90: #{tpu_custom_call.1} parent=1 // pred_check
      _
    $region91: #{tpu_custom_call.1} parent=1 // pred_check_branch
      %205 = sbr.rel (0) target = $region93
    $region92: #{tpu_custom_call.1} parent=1 // pred_region
      %207 = dma.done [#allocation9], 192
    $region93: #{tpu_custom_call.1} parent=1 // pred_fallthru
      _
    // Predicated region
    $region94: #{tpu_custom_call.1} parent=1 // pred_check
      _
    $region95: #{tpu_custom_call.1} parent=1 // pred_check_branch
      %209 = sbr.rel (0) target = $region97
    $region96: #{tpu_custom_call.1} parent=1 // pred_region
      %211 = dma.done [#allocation9], 64
    $region97: #{tpu_custom_call.1} parent=1 // pred_fallthru
      _
    // Predicated region
    $region98: #{tpu_custom_call.1} parent=1 // pred_check
      _
    $region99: #{tpu_custom_call.1} parent=1 // pred_check_branch
      %213 = sbr.rel (0) target = $region101
    $region100: #{tpu_custom_call.1} parent=1 // pred_region
      %215 = dma.done [#allocation12], 16
    $region101: #{tpu_custom_call.1} parent=1 // pred_fallthru
      _
    // Predicated region
    $region102: #{tpu_custom_call.1} parent=1 // pred_check
      _
    $region103: #{tpu_custom_call.1} parent=1 // pred_check_branch
      %217 = sbr.rel (0) target = $region105
    $region104: #{tpu_custom_call.1} parent=1 // pred_region
      %219 = dma.done [#allocation12], 256
    $region105: #{tpu_custom_call.1} parent=1 // pred_fallthru
      _
    // Predicated region
    $region106: #{tpu_custom_call.1} parent=1 // pred_check
      _
    $region107: #{tpu_custom_call.1} parent=1 // pred_check_branch
      %221 = sbr.rel (0) target = $region109
    $region108: #{tpu_custom_call.1} parent=1 // pred_region
      %223 = dma.done [#allocation15], 16
    $region109: #{tpu_custom_call.1} parent=1 // pred_fallthru
      _
    // Predicated region
    $region110: #{tpu_custom_call.1} parent=1 // pred_check
      _
    $region111: #{tpu_custom_call.1} parent=1 // pred_check_branch
      %225 = sbr.rel (0) target = $region113
    $region112: #{tpu_custom_call.1} parent=1 // pred_region
      %227 = dma.done [#allocation15], 256
    $region113: #{tpu_custom_call.1} parent=1 // pred_fallthru
      _
    // Predicated region
    $region114: #{tpu_custom_call.1} parent=1 // pred_check
      _
    $region115: #{tpu_custom_call.1} parent=1 // pred_check_branch
      %229 = sbr.rel (0) target = $region117
    $region116: #{tpu_custom_call.1} parent=1 // pred_region
      %231 = dma.done [#allocation18], 256
    $region117: #{tpu_custom_call.1} parent=1 // pred_fallthru
      _
    // Predicated region
    $region118: #{tpu_custom_call.1} parent=1 // pred_check
      _
    $region119: #{tpu_custom_call.1} parent=1 // pred_check_branch
      %233 = sbr.rel (0) target = $region121
    $region120: #{tpu_custom_call.1} parent=1 // pred_region
      %235 = dma.done [#allocation18], 256
    $region121: #{tpu_custom_call.1} parent=1 // pred_fallthru
      _
    // Predicated region
    $region122: #{tpu_custom_call.1} parent=1 // pred_check
      _
    $region123: #{tpu_custom_call.1} parent=1 // pred_check_branch
      %237 = sbr.rel (0) target = $region125
    $region124: #{tpu_custom_call.1} parent=1 // pred_region
      %239 = dma.done [#allocation21], 256
    $region125: #{tpu_custom_call.1} parent=1 // pred_fallthru
      _
    %v241 = vld [vmem:[%s0] sm:$0xff]
    %v242 = vld [vmem:[%s0 + $0x8] sm:$0xff]
    %v243 = vpack.c.bf16 %v242, %v241
    %v244 = vld [vmem:[%s1] sm:$0xff]
    %v245 = vld [vmem:[%s1 + $0x8] sm:$0xff]
    %v246 = vpack.c.bf16 %v245, %v244
    %v247 = vld [vmem:[#allocation2] sm:$0xf]
    %v248 = vld [vmem:[#allocation2 + $0x4] sm:$0xf]
    %v249 = vld [vmem:[#allocation2 + $0x8] sm:$0xf]
    %v250 = vld [vmem:[#allocation5] sm:$0xf]
    %vm251 = vcmask 64512
    %v253 = vsel %vm251, %v246, 0
    %vm255 = vcmask 1043456
    %v257 = vsel %vm255, %v250, 0
    %259 = vmatpush.bf16.msra.mxu0 0
    %260 = vmatpush.bf16.msra.mxu0 0
    %261 = vmatpush.bf16.msra.mxu0 0
    %262 = vmatpush.bf16.msra.mxu0 0
    %263 = vmatpush.bf16.msra.mxu0 0
    %264 = vmatpush.bf16.msra.mxu0 0
    %265 = vmatpush.bf16.msra.mxu0 0
    %266 = vmatpush.bf16.msra.mxu0 %v257
    %267 = vmatmul.bf16.gmra.mxu0 %v253
    %v268 = vpop.f32.mrf.mxu0
    %v269 = vadd.f32 0.0, %v268
    %v270 = vpop.f32.mrf.mxu0
    %v271 = vadd.f32 0.0, %v270
    %272 = vdwg.mxu0
    %v276 = vunpack.c.l.b16 %v247
    %v277 = vunpack.c.l.b16 %v248
    %v278 = vunpack.c.l.b16 %v249
    %v279 = vpack.c.b16 %v277, %v276
    %v280 = vpack.c.b16 %v278, %v278
    %vm282 = vcmask 195584
    %v284 = vsel %vm282, %v243, 0
    %v287 = vsel %vm255, %v280, 0
    %289 = vmatpush.bf16.msra.mxu0 0
    %290 = vmatpush.bf16.msra.mxu0 0
    %291 = vmatpush.bf16.msra.mxu0 0
    %292 = vmatpush.bf16.msra.mxu0 0
    %293 = vmatpush.bf16.msra.mxu0 0
    %294 = vmatpush.bf16.msra.mxu0 0
    %295 = vmatpush.bf16.msra.mxu0 %v287
    %296 = vmatpush.bf16.msra.mxu0 %v279
    %297 = vmatmul.bf16.gmra.mxu0 %v284
    %v298 = vpop.f32.mrf.mxu0
    %v299 = vadd.f32 %v269, %v298
    %v300 = vpop.f32.mrf.mxu0
    %v301 = vadd.f32 %v271, %v300
    %302 = vdwg.mxu0
    %v303 = vld [vmem:[#allocation7] sm:$0x1]
    %v305 = vperm.slane %v303, 0
    %v307 = vadd.f32 %v299, %v305
    %v308 = vadd.f32 %v301, %v305
    %v309 = vmax.f32 %v307, 0.0
    %v310 = vmax.f32 %v308, 0.0
    %v311 = vpack.c.bf16 %v310, %v309
    %v312 = vld [vmem:[#allocation8] sm:$0xf]
    %v313 = vld [vmem:[#allocation8 + $0x4] sm:$0xf]
    %v314 = vld [vmem:[#allocation8 + $0x8] sm:$0xf]
    %v315 = vld [vmem:[#allocation10] sm:$0xf]
    %v317 = vsel %vm255, %v315, 0
    %319 = vmatpush.bf16.msra.mxu0 0
    %320 = vmatpush.bf16.msra.mxu0 0
    %321 = vmatpush.bf16.msra.mxu0 0
    %322 = vmatpush.bf16.msra.mxu0 0
    %323 = vmatpush.bf16.msra.mxu0 0
    %324 = vmatpush.bf16.msra.mxu0 0
    %325 = vmatpush.bf16.msra.mxu0 0
    %326 = vmatpush.bf16.msra.mxu0 %v317
    %327 = vmatmul.bf16.gmra.mxu0 %v253
    %v328 = vpop.f32.mrf.mxu0
    %v329 = vadd.f32 0.0, %v328
    %v330 = vpop.f32.mrf.mxu0
    %v331 = vadd.f32 0.0, %v330
    %332 = vdwg.mxu0
    %v336 = vunpack.c.l.b16 %v312
    %v337 = vunpack.c.l.b16 %v313
    %v338 = vunpack.c.l.b16 %v314
    %v339 = vpack.c.b16 %v337, %v336
    %v340 = vpack.c.b16 %v338, %v338
    %v343 = vsel %vm255, %v340, 0
    %345 = vmatpush.bf16.msra.mxu0 0
    %346 = vmatpush.bf16.msra.mxu0 0
    %347 = vmatpush.bf16.msra.mxu0 0
    %348 = vmatpush.bf16.msra.mxu0 0
    %349 = vmatpush.bf16.msra.mxu0 0
    %350 = vmatpush.bf16.msra.mxu0 0
    %351 = vmatpush.bf16.msra.mxu0 %v343
    %352 = vmatpush.bf16.msra.mxu0 %v339
    %353 = vmatmul.bf16.gmra.mxu0 %v284
    %v354 = vpop.f32.mrf.mxu0
    %v355 = vadd.f32 %v329, %v354
    %v356 = vpop.f32.mrf.mxu0
    %v357 = vadd.f32 %v331, %v356
    %358 = vdwg.mxu0
    %v359 = vld [vmem:[#allocation11] sm:$0x1]
    %v361 = vperm.slane %v359, 0
    %v363 = vadd.f32 %v355, %v361
    %v364 = vadd.f32 %v357, %v361
    %v365 = vmax.f32 %v363, 0.0
    %v366 = vmax.f32 %v364, 0.0
    %v367 = vpack.c.bf16 %v366, %v365
    %v368 = vld [vmem:[#allocation13] sm:$0xf]
    %v369 = vld [vmem:[#allocation13 + $0x4] sm:$0xf]
    %v370 = vld [vmem:[#allocation13 + $0x8] sm:$0xf]
    %v371 = vld [vmem:[#allocation13 + $0xc] sm:$0xf]
    %v372 = vld [vmem:[#allocation14] sm:$0x1]
    %v374 = vperm.slane %v372, 0
    %v380 = vunpack.c.l.b16 %v368
    %v381 = vunpack.c.l.b16 %v369
    %v382 = vunpack.c.l.b16 %v370
    %v383 = vunpack.c.l.b16 %v371
    %v384 = vpack.c.b16 %v381, %v380
    %v385 = vpack.c.b16 %v383, %v382
    %vm388 = vcmask 261120
    %v390 = vsel %vm388, %v311, 0
    %392 = vmatpush.bf16.msra.mxu0 0
    %393 = vmatpush.bf16.msra.mxu0 0
    %394 = vmatpush.bf16.msra.mxu0 0
    %395 = vmatpush.bf16.msra.mxu0 0
    %396 = vmatpush.bf16.msra.mxu0 0
    %397 = vmatpush.bf16.msra.mxu0 0
    %398 = vmatpush.bf16.msra.mxu0 %v385
    %399 = vmatpush.bf16.msra.mxu0 %v384
    %400 = vmatmul.bf16.gmra.mxu0 %v390
    %v401 = vpop.f32.mrf.mxu0
    %v402 = vadd.f32 %v374, %v401
    %v403 = vpop.f32.mrf.mxu0
    %v404 = vadd.f32 %v374, %v403
    %405 = vdwg.mxu0
    %v406 = vmax.f32 %v402, 0.0
    %v407 = vmax.f32 %v404, 0.0
    %v408 = vpack.c.bf16 %v407, %v406
    %v409 = vld [vmem:[%s10] sm:$0xf]
    %v410 = vld [vmem:[%s10 + $0x4] sm:$0xf]
    %v411 = vld [vmem:[%s10 + $0x8] sm:$0xf]
    %v412 = vld [vmem:[%s10 + $0xc] sm:$0xf]
    %v413 = vld [vmem:[%s11] sm:$0x1]
    %v415 = vperm.slane %v413, 0
    %v421 = vunpack.c.l.b16 %v409
    %v422 = vunpack.c.l.b16 %v410
    %v423 = vunpack.c.l.b16 %v411
    %v424 = vunpack.c.l.b16 %v412
    %v425 = vpack.c.b16 %v422, %v421
    %v426 = vpack.c.b16 %v424, %v423
    %v430 = vsel %vm388, %v367, 0
    %432 = vmatpush.bf16.msra.mxu0 0
    %433 = vmatpush.bf16.msra.mxu0 0
    %434 = vmatpush.bf16.msra.mxu0 0
    %435 = vmatpush.bf16.msra.mxu0 0
    %436 = vmatpush.bf16.msra.mxu0 0
    %437 = vmatpush.bf16.msra.mxu0 0
    %438 = vmatpush.bf16.msra.mxu0 %v426
    %439 = vmatpush.bf16.msra.mxu0 %v425
    %440 = vmatmul.bf16.gmra.mxu0 %v430
    %v441 = vpop.f32.mrf.mxu0
    %v442 = vadd.f32 %v415, %v441
    %v443 = vpop.f32.mrf.mxu0
    %v444 = vadd.f32 %v415, %v443
    %445 = vdwg.mxu0
    %v446 = vmax.f32 %v442, 0.0
    %v447 = vmax.f32 %v444, 0.0
    %v448 = vpack.c.bf16 %v447, %v446
    %v449 = vld [vmem:[#allocation16] sm:$0xf]
    %v450 = vld [vmem:[#allocation16 + $0x4] sm:$0xf]
    %v451 = vld [vmem:[#allocation16 + $0x8] sm:$0xf]
    %v452 = vld [vmem:[#allocation16 + $0xc] sm:$0xf]
    %v453 = vld [vmem:[%s13] sm:$0x1]
    %v455 = vperm.slane %v453, 0
    %v461 = vunpack.c.l.b16 %v449
    %v462 = vunpack.c.l.b16 %v450
    %v463 = vunpack.c.l.b16 %v451
    %v464 = vunpack.c.l.b16 %v452
    %v465 = vpack.c.b16 %v462, %v461
    %v466 = vpack.c.b16 %v464, %v463
    %v470 = vsel %vm388, %v408, 0
    %472 = vmatpush.bf16.msra.mxu0 0
    %473 = vmatpush.bf16.msra.mxu0 0
    %474 = vmatpush.bf16.msra.mxu0 0
    %475 = vmatpush.bf16.msra.mxu0 0
    %476 = vmatpush.bf16.msra.mxu0 0
    %477 = vmatpush.bf16.msra.mxu0 0
    %478 = vmatpush.bf16.msra.mxu0 %v466
    %479 = vmatpush.bf16.msra.mxu0 %v465
    %480 = vmatmul.bf16.gmra.mxu0 %v470
    %v481 = vpop.f32.mrf.mxu0
    %v482 = vadd.f32 %v455, %v481
    %v483 = vpop.f32.mrf.mxu0
    %v484 = vadd.f32 %v455, %v483
    %485 = vdwg.mxu0
    %v486 = vmax.f32 %v482, 0.0
    %v487 = vmax.f32 %v484, 0.0
    %v488 = vpack.c.bf16 %v487, %v486
    %v489 = vld [vmem:[#allocation17] sm:$0xf]
    %v490 = vld [vmem:[#allocation17 + $0x4] sm:$0xf]
    %v491 = vld [vmem:[#allocation17 + $0x8] sm:$0xf]
    %v492 = vld [vmem:[#allocation17 + $0xc] sm:$0xf]
    %v493 = vld [vmem:[%s15] sm:$0x1]
    %v495 = vperm.slane %v493, 0
    %v501 = vunpack.c.l.b16 %v489
    %v502 = vunpack.c.l.b16 %v490
    %v503 = vunpack.c.l.b16 %v491
    %v504 = vunpack.c.l.b16 %v492
    %v505 = vpack.c.b16 %v502, %v501
    %v506 = vpack.c.b16 %v504, %v503
    %v510 = vsel %vm388, %v448, 0
    %512 = vmatpush.bf16.msra.mxu0 0
    %513 = vmatpush.bf16.msra.mxu0 0
    %514 = vmatpush.bf16.msra.mxu0 0
    %515 = vmatpush.bf16.msra.mxu0 0
    %516 = vmatpush.bf16.msra.mxu0 0
    %517 = vmatpush.bf16.msra.mxu0 0
    %518 = vmatpush.bf16.msra.mxu0 %v506
    %519 = vmatpush.bf16.msra.mxu0 %v505
    %520 = vmatmul.bf16.gmra.mxu0 %v510
    %v521 = vpop.f32.mrf.mxu0
    %v522 = vadd.f32 %v495, %v521
    %v523 = vpop.f32.mrf.mxu0
    %v524 = vadd.f32 %v495, %v523
    %525 = vdwg.mxu0
    %v526 = vmax.f32 %v522, 0.0
    %v527 = vmax.f32 %v524, 0.0
    %v528 = vpack.c.bf16 %v527, %v526
    %v529 = vld [vmem:[#allocation19] sm:$0xf]
    %v530 = vld [vmem:[#allocation19 + $0x4] sm:$0xf]
    %v531 = vld [vmem:[#allocation19 + $0x8] sm:$0xf]
    %v532 = vld [vmem:[#allocation19 + $0xc] sm:$0xf]
    %v533 = vld [vmem:[#allocation20] sm:$0xf]
    %v534 = vld [vmem:[#allocation20 + $0x4] sm:$0xf]
    %v535 = vld [vmem:[#allocation20 + $0x8] sm:$0xf]
    %v536 = vld [vmem:[#allocation20 + $0xc] sm:$0xf]
    %v541 = vunpack.c.l.b16 %v533
    %v542 = vunpack.c.l.b16 %v534
    %v543 = vunpack.c.l.b16 %v535
    %v544 = vunpack.c.l.b16 %v536
    %v545 = vpack.c.b16 %v542, %v541
    %v546 = vpack.c.b16 %v544, %v543
    %v550 = vsel %vm388, %v528, 0
    %552 = vmatpush.bf16.msra.mxu0 0
    %553 = vmatpush.bf16.msra.mxu0 0
    %554 = vmatpush.bf16.msra.mxu0 0
    %555 = vmatpush.bf16.msra.mxu0 0
    %556 = vmatpush.bf16.msra.mxu0 0
    %557 = vmatpush.bf16.msra.mxu0 0
    %558 = vmatpush.bf16.msra.mxu0 %v546
    %559 = vmatpush.bf16.msra.mxu0 %v545
    %560 = vmatmul.bf16.gmra.mxu0 %v550
    %v561 = vpop.f32.mrf.mxu0
    %v562 = vadd.f32 0.0, %v561
    %v563 = vpop.f32.mrf.mxu0
    %v564 = vadd.f32 0.0, %v563
    %565 = vdwg.mxu0
    %v570 = vunpack.c.l.b16 %v529
    %v571 = vunpack.c.l.b16 %v530
    %v572 = vunpack.c.l.b16 %v531
    %v573 = vunpack.c.l.b16 %v532
    %v574 = vpack.c.b16 %v571, %v570
    %v575 = vpack.c.b16 %v573, %v572
    %v579 = vsel %vm388, %v488, 0
    %581 = vmatpush.bf16.msra.mxu0 0
    %582 = vmatpush.bf16.msra.mxu0 0
    %583 = vmatpush.bf16.msra.mxu0 0
    %584 = vmatpush.bf16.msra.mxu0 0
    %585 = vmatpush.bf16.msra.mxu0 0
    %586 = vmatpush.bf16.msra.mxu0 0
    %587 = vmatpush.bf16.msra.mxu0 %v575
    %588 = vmatpush.bf16.msra.mxu0 %v574
    %589 = vmatmul.bf16.gmra.mxu0 %v579
    %v590 = vpop.f32.mrf.mxu0
    %v591 = vadd.f32 %v562, %v590
    %v592 = vpop.f32.mrf.mxu0
    %v593 = vadd.f32 %v564, %v592
    %594 = vdwg.mxu0
    %v595 = vld [vmem:[%s18] sm:$0x1]
    %v597 = vperm.slane %v595, 0
    %v599 = vadd.f32 %v591, %v597
    %v600 = vadd.f32 %v593, %v597
    %v601 = vsub.f32 0.0, %v599
    %v602 = vsub.f32 0.0, %v600
    %v603 = vmul.f32 %v601, 1.442695
    %v604 = vpow.pop %v603
    %v605 = vmul.f32 %v602, 1.442695
    %v606 = vpow.pop %v605
    %v607 = vadd.f32 %v604, 1.0
    %v608 = vadd.f32 %v606, 1.0
    %v609 = vrcp.pop %v607
    %v610 = vrcp.pop %v608
    %611 = vst [vmem:[#allocation22] sm:$0xff] %v609
    %612 = vst [vmem:[#allocation22 + $0x8] sm:$0xff] %v610
    // Predicated region
    $region126: #{tpu_custom_call.1} parent=1 // pred_check
      _
    $region127: #{tpu_custom_call.1} parent=1 // pred_check_branch
      %614 = sbr.rel (0) target = $region129
    $region128: #{tpu_custom_call.1} parent=1 // pred_region
      %616 = vsyncadd [#allocation4], 0
      %s617 = sshll.u32 [#allocation22], 4
      %s618 = int_to_ptr.vmem [resolvable:$true] %s617
      %s619 = sshll.u32 %s19, 4
      %s620 = int_to_ptr.hbm [resolvable:$true] %s619
      %625 = dma.vmem_to_hbm [thread:$0]  %s618, 256, %s620, [#allocation4], 128, 128, 8
    $region129: #{tpu_custom_call.1} parent=1 // pred_fallthru
      _
    // Predicated region
    $region130: #{tpu_custom_call.1} parent=1 // pred_check
      _
    $region131: #{tpu_custom_call.1} parent=1 // pred_check_branch
      %627 = sbr.rel (0) target = $region133
    $region132: #{tpu_custom_call.1} parent=1 // pred_region
      %629 = dma.done [#allocation4], 256
    $region133: #{tpu_custom_call.1} parent=1 // pred_fallthru
      _
    %630 = vsyncpa [#allocation3], 1
    %631 = vsyncpa [#allocation6], 1
    %632 = vsyncpa [#allocation9], 1
    %633 = vsyncpa [#allocation12], 1
    %634 = vsyncpa [#allocation15], 1
    %635 = vsyncpa [#allocation18], 1
    %636 = vsyncpa [#allocation21], 1
    %637 = vsyncpa [#allocation4], 1

</llo_original>
